<compile_context>
chip_gen: v6e
topology: v6e:2x2x1
jax: 0.10.0
libtpu: 0.0.40
codegen_flags: <defaults>
</compile_context>

<pallas_src>
import functools

import jax
import jax.numpy as jnp
from jax.experimental import pallas as pl
from jax.experimental.pallas import tpu as pltpu

EPS = 1e-6


def _residual_kernel(p_drop, alpha, bias, x_ref, rb_ref, w_ref, b_ref, o_ref):
    """One row-tile: layernorm -> linear sublayer -> dropout -> residual add."""
    x = x_ref[...].astype(jnp.float32)                       # (tm, D)
    d = x.shape[-1]

    # --- LayerNormalization (torch.std is unbiased: divide by D-1) ---
    mean = jnp.mean(x, axis=-1, keepdims=True)
    xc = x - mean
    var = jnp.sum(xc * xc, axis=-1, keepdims=True) / max(d - 1, 1)
    std = jnp.sqrt(var)
    y = alpha * xc / (std + EPS) + bias

    # --- sublayer: Linear(D, D) on the MXU, operands in native dtype, f32 acc ---
    z = jnp.dot(y.astype(w_ref.dtype), w_ref[...],
                preferred_element_type=jnp.float32) + b_ref[...].astype(jnp.float32)

    # --- inverted dropout via integer compare on precomputed random bits ---
    # TODO(synk): randomness cannot bit-match torch.nn.Dropout; same distribution only.
    if p_drop > 0.0:
        thresh = jnp.int32(int(round(p_drop * (1 << 24))))   # rb in [0, 2^24)
        keep = rb_ref[...] >= thresh
        z = jnp.where(keep, z * (1.0 / (1.0 - p_drop)), 0.0)

    # --- residual ---
    o_ref[...] = (x + z).astype(o_ref.dtype)


def residual_connection(x, w, b, *, p_drop=0.1, seed=0, tm=256, alpha=1.0, bias=0.0):
    """x: (B, S, D); w: (D, D); b: (D,). Returns x + dropout(LN(x) @ W + b)."""
    B, S, D = x.shape
    M = B * S

    # Row tile: as large as requested, but no larger than the (8-padded) row count.
    tm = int(max(8, min(tm, pl.cdiv(M, 8) * 8)))
    M_pad = pl.cdiv(M, tm) * tm

    x2 = x.reshape(M, D)
    if M_pad != M:
        x2 = jnp.pad(x2, ((0, M_pad - M), (0, 0)))
    b2 = b.reshape(1, D)

    # Host-side uniform ints in [0, 2^24) for the dropout mask (one per element).
    rb = jax.random.randint(jax.random.PRNGKey(seed), (M_pad, D),
                            0, 1 << 24, dtype=jnp.int32)

    kernel = functools.partial(_residual_kernel, float(p_drop), float(alpha), float(bias))

    # VMEM budget: double-buffered x/rb/out tiles + resident (D,D) weight (+bias).
    itemsize = jnp.dtype(x.dtype).itemsize
    w_bytes = jnp.dtype(w.dtype).itemsize
    est = 2 * tm * D * (2 * itemsize + 4) + 2 * (D * D + D) * w_bytes
    vmem_limit = int(min(64 * 2**20, max(32 * 2**20, 2 * est)))

    # TODO(synk): for best performance d_model should be a multiple of 128 (lane-dense
    # loads/stores and full MXU K/N); the demo D=32 falls back to masked lanes.
    out = pl.pallas_call(
        kernel,
        out_shape=jax.ShapeDtypeStruct((M_pad, D), x.dtype),
        grid=(M_pad // tm,),
        in_specs=[
            pl.BlockSpec((tm, D), lambda i: (i, 0)),   # x tile
            pl.BlockSpec((tm, D), lambda i: (i, 0)),   # dropout random bits tile
            pl.BlockSpec((D, D), lambda i: (0, 0)),    # sublayer weight (resident)
            pl.BlockSpec((1, D), lambda i: (0, 0)),    # sublayer bias (resident)
        ],
        out_specs=pl.BlockSpec((tm, D), lambda i: (i, 0)),
        compiler_params=pltpu.CompilerParams(
            dimension_semantics=("parallel",),         # tiles are independent -> megacore
            vmem_limit_bytes=vmem_limit,
        ),
    )(x2, rb, w, b2)

    return out[:M].reshape(B, S, D)


if __name__ == "__main__":
    B, S, D = 2, 8, 32
    key = jax.random.PRNGKey(0)
    kx, kw, kb = jax.random.split(key, 3)

    x = jax.random.normal(kx, (B, S, D), dtype=jnp.float32)
    # Deterministic "sublayer" parameters (Linear(D, D)).
    w = jax.random.normal(kw, (D, D), dtype=jnp.float32) * 0.02
    b = jax.random.normal(kb, (D,), dtype=jnp.float32) * 0.02

    out = residual_connection(x, w, b, p_drop=0.1, seed=0)
    jax.block_until_ready(out)
    assert out.shape == (B, S, D) and out.dtype == x.dtype
    assert bool(jnp.all(jnp.isfinite(out)))
    print("KERNEL_OK")
</pallas_src>

<mosaic_0001>
module attributes {stable_mosaic.version = 11 : i64} {
  func.func @_residual_kernel(%arg0: i32, %arg1: memref<16x32xf32, #tpu.memory_space<vmem>>, %arg2: memref<16x32xi32, #tpu.memory_space<vmem>>, %arg3: memref<32x32xf32, #tpu.memory_space<vmem>>, %arg4: memref<1x32xf32, #tpu.memory_space<vmem>>, %arg5: memref<16x32xf32, #tpu.memory_space<vmem>>) attributes {dimension_semantics = [#tpu.dimension_semantics<parallel>], iteration_bounds = array<i64: 1>, scalar_prefetch = 0 : i64, scratch_operands = 0 : i64, tpu.core_type = #tpu.core_type<tc>, window_params = [{transform_indices = @transform_0, window_bounds = array<i64: 16, 32>}, {transform_indices = @transform_1, window_bounds = array<i64: 16, 32>}, {pipeline_mode = #tpu.pipeline_mode<synchronous>, transform_indices = @transform_2, window_bounds = array<i64: 32, 32>}, {pipeline_mode = #tpu.pipeline_mode<synchronous>, transform_indices = @transform_3, window_bounds = array<i64: 1, 32>}, {transform_indices = @transform_4, window_bounds = array<i64: 16, 32>}]} {
    %c0 = arith.constant 0 : index
    %c0_0 = arith.constant 0 : index
    %0 = vector.load %arg1[%c0, %c0_0] : memref<16x32xf32, #tpu.memory_space<vmem>>, vector<16x32xf32>
    %cst = arith.constant dense<0.000000e+00> : vector<16xf32>
    %1 = vector.multi_reduction <add>, %0, %cst [1] : vector<16x32xf32> to vector<16xf32>
    %2 = vector.shape_cast %1 : vector<16xf32> to vector<16x1xf32>
    %cst_1 = arith.constant 3.200000e+01 : f32
    %3 = vector.broadcast %cst_1 : f32 to vector<16x1xf32>
    %4 = arith.divf %2, %3 : vector<16x1xf32>
    %5 = vector.broadcast %4 : vector<16x1xf32> to vector<16x32xf32>
    %6 = arith.subf %0, %5 : vector<16x32xf32>
    %7 = arith.mulf %6, %6 : vector<16x32xf32>
    %cst_2 = arith.constant dense<0.000000e+00> : vector<16xf32>
    %8 = vector.multi_reduction <add>, %7, %cst_2 [1] : vector<16x32xf32> to vector<16xf32>
    %9 = vector.shape_cast %8 : vector<16xf32> to vector<16x1xf32>
    %cst_3 = arith.constant 3.100000e+01 : f32
    %10 = vector.broadcast %cst_3 : f32 to vector<16x1xf32>
    %11 = arith.divf %9, %10 : vector<16x1xf32>
    %12 = math.sqrt %11 : vector<16x1xf32>
    %cst_4 = arith.constant 1.000000e+00 : f32
    %13 = vector.broadcast %cst_4 : f32 to vector<16x32xf32>
    %14 = arith.mulf %13, %6 : vector<16x32xf32>
    %cst_5 = arith.constant 9.99999997E-7 : f32
    %15 = vector.broadcast %cst_5 : f32 to vector<16x1xf32>
    %16 = arith.addf %12, %15 : vector<16x1xf32>
    %17 = vector.broadcast %16 : vector<16x1xf32> to vector<16x32xf32>
    %18 = arith.divf %14, %17 : vector<16x32xf32>
    %cst_6 = arith.constant 0.000000e+00 : f32
    %19 = vector.broadcast %cst_6 : f32 to vector<16x32xf32>
    %20 = arith.addf %18, %19 : vector<16x32xf32>
    %c0_7 = arith.constant 0 : index
    %c0_8 = arith.constant 0 : index
    %21 = vector.load %arg3[%c0_7, %c0_8] : memref<32x32xf32, #tpu.memory_space<vmem>>, vector<32x32xf32>
    %cst_9 = arith.constant dense<0.000000e+00> : vector<16x32xf32>
    %22 = tpu.matmul %20, %21, %cst_9 {dimension_numbers = #tpu.dot_dimension_numbers<[1], [0], [0], [1], [0, 0, 1, 1], [], []>} : vector<16x32xf32>, vector<32x32xf32>, vector<16x32xf32> -> vector<16x32xf32>
    %c0_10 = arith.constant 0 : index
    %c0_11 = arith.constant 0 : index
    %23 = vector.load %arg4[%c0_10, %c0_11] : memref<1x32xf32, #tpu.memory_space<vmem>>, vector<1x32xf32>
    %24 = vector.broadcast %23 : vector<1x32xf32> to vector<16x32xf32>
    %25 = arith.addf %22, %24 : vector<16x32xf32>
    %c0_12 = arith.constant 0 : index
    %c0_13 = arith.constant 0 : index
    %26 = vector.load %arg2[%c0_12, %c0_13] : memref<16x32xi32, #tpu.memory_space<vmem>>, vector<16x32xi32>
    %c1677722_i32 = arith.constant 1677722 : i32
    %27 = vector.broadcast %c1677722_i32 : i32 to vector<16x32xi32>
    %28 = arith.cmpi sge, %26, %27 : vector<16x32xi32>
    %cst_14 = arith.constant 1.11111116 : f32
    %29 = vector.broadcast %cst_14 : f32 to vector<16x32xf32>
    %30 = arith.mulf %25, %29 : vector<16x32xf32>
    %cst_15 = arith.constant 0.000000e+00 : f32
    %31 = vector.broadcast %cst_15 : f32 to vector<16x32xf32>
    %32 = arith.select %28, %30, %31 : vector<16x32xi1>, vector<16x32xf32>
    %33 = arith.addf %0, %32 : vector<16x32xf32>
    %c0_16 = arith.constant 0 : index
    %c0_17 = arith.constant 0 : index
    %34 = vector.load %arg5[%c0_16, %c0_17] : memref<16x32xf32, #tpu.memory_space<vmem>>, vector<16x32xf32>
    tpu.vector_store %arg5[%c0_16, %c0_17], %33 {strides = array<i32>} : memref<16x32xf32, #tpu.memory_space<vmem>>, vector<16x32xf32>,
    return
  }
  func.func @transform_0(%arg0: i32) -> (i32, i32) {
    %c0_i32 = arith.constant 0 : i32
    %c0_i32_0 = arith.constant 0 : i32
    return %arg0, %c0_i32 : i32, i32
  }
  func.func @transform_1(%arg0: i32) -> (i32, i32) {
    %c0_i32 = arith.constant 0 : i32
    %c0_i32_0 = arith.constant 0 : i32
    return %arg0, %c0_i32 : i32, i32
  }
  func.func @transform_2(%arg0: i32) -> (i32, i32) {
    %c0_i32 = arith.constant 0 : i32
    %c0_i32_0 = arith.constant 0 : i32
    %c0_i32_1 = arith.constant 0 : i32
    return %c0_i32, %c0_i32_0 : i32, i32
  }
  func.func @transform_3(%arg0: i32) -> (i32, i32) {
    %c0_i32 = arith.constant 0 : i32
    %c0_i32_0 = arith.constant 0 : i32
    %c0_i32_1 = arith.constant 0 : i32
    return %c0_i32, %c0_i32_0 : i32, i32
  }
  func.func @transform_4(%arg0: i32) -> (i32, i32) {
    %c0_i32 = arith.constant 0 : i32
    %c0_i32_0 = arith.constant 0 : i32
    return %arg0, %c0_i32 : i32, i32
  }
}

</mosaic_0001>

<llo_original>
// kernel: tpu_custom_call.1
$region0: #{tpu_custom_call.1}
  #allocation0 [shape = 'u32[]', space=smem, size = 0x4, offset = 0x4, fixed_abs, tag = 'smem constant byte address 0x4 - core index']
  #allocation1 [shape = 'u32[144,128]{1,0:T(1,128)}', space=vmem, size = 0x12000, scoped, tag = 'internal scratch']
  %s0 = inlined_call_operand.hbm [shape: f32[16,32], index: 0, kind: input, shape index: {}]
  %s1 = inlined_call_operand.hbm [shape: s32[16,32], index: 1, kind: input, shape index: {}]
  %s2 = inlined_call_operand.hbm [shape: f32[32,32], index: 2, kind: input, shape index: {}]
  %s3 = inlined_call_operand.vmem [shape: f32[1,32], index: 3, kind: input, shape index: {}]
  %s4 = inlined_call_operand.hbm [shape: f32[16,32], index: 4, kind: output, shape index: {}]
  %s5 = sld [smem:[#allocation0]]
  $region38: #{tpu_custom_call.1} parent=0
    _
  %s7 = ssub.s32 1, %s5
  %s8 = scalar_select 0, %s7, %s5
  $region1: #{tpu_custom_call.1} parent=0
    #allocation2 [shape = 'u8[8192]{0}', space=vmem, size = 0x2000, scoped, tag = 'input window, operand 0, single buffered']
    #allocation3 [shape = 's32[1]{0}', space=sflag, size = 0x4, scoped, tag = 'scoped memory for tpu_custom_call.1']
    #allocation4 [shape = 's32[1]{0}', space=sflag, size = 0x4, scoped, tag = 'scoped memory for tpu_custom_call.1']
    #allocation5 [shape = 'u8[8192]{0}', space=vmem, size = 0x2000, scoped, tag = 'input window, operand 1, single buffered']
    #allocation6 [shape = 's32[1]{0}', space=sflag, size = 0x4, scoped, tag = 'scoped memory for tpu_custom_call.1']
    #allocation7 [shape = 'u8[16384]{0}', space=vmem, size = 0x4000, scoped, tag = 'input window, operand 2, single buffered']
    #allocation8 [shape = 'u8[8192]{0}', space=vmem, size = 0x2000, scoped, tag = 'output window, operand 0, single buffered']
    %9 = vsyncpa [#allocation3], 0
    %10 = vsyncpa [#allocation6], 0
    %11 = vsyncpa [#allocation4], 0
    // Predicated region
    $region2: #{tpu_custom_call.1} parent=1 // pred_check
      _
    $region3: #{tpu_custom_call.1} parent=1 // pred_check_branch
      %13 = sbr.rel (0) target = $region5
    $region4: #{tpu_custom_call.1} parent=1 // pred_region
      %s15 = ssub.s32 256, 256
      %16 = vsyncadd [#allocation3], %s15
      %s17 = sshll.u32 [#allocation2], 4
      %s18 = int_to_ptr.vmem [resolvable:$true] %s17
      %23 = dma.hbm_to_vmem [thread:$0]  %s0, 256, %s18, [#allocation3], 128, 128, 8
    $region5: #{tpu_custom_call.1} parent=1 // pred_fallthru
      _
    // Predicated region
    $region6: #{tpu_custom_call.1} parent=1 // pred_check
      _
    $region7: #{tpu_custom_call.1} parent=1 // pred_check_branch
      %25 = sbr.rel (0) target = $region9
    $region8: #{tpu_custom_call.1} parent=1 // pred_region
      %s27 = ssub.s32 256, 256
      %28 = vsyncadd [#allocation6], %s27
      %s29 = sshll.u32 [#allocation5], 4
      %s30 = int_to_ptr.vmem [resolvable:$true] %s29
      %35 = dma.hbm_to_vmem [thread:$0]  %s1, 256, %s30, [#allocation6], 128, 128, 8
    $region9: #{tpu_custom_call.1} parent=1 // pred_fallthru
      _
    // Predicated region
    $region10: #{tpu_custom_call.1} parent=1 // pred_check
      _
    $region11: #{tpu_custom_call.1} parent=1 // pred_check_branch
      %37 = sbr.rel (0) target = $region13
    $region12: #{tpu_custom_call.1} parent=1 // pred_region
      %s39 = ssub.s32 512, 512
      %40 = vsyncadd [#allocation6], %s39
      %s41 = sshll.u32 [#allocation7], 4
      %s42 = int_to_ptr.vmem [resolvable:$true] %s41
      %47 = dma.hbm_to_vmem [thread:$0]  %s2, 512, %s42, [#allocation6], 128, 128, 8
    $region13: #{tpu_custom_call.1} parent=1 // pred_fallthru
      _
    // Predicated region
    $region14: #{tpu_custom_call.1} parent=1 // pred_check
      _
    $region15: #{tpu_custom_call.1} parent=1 // pred_check_branch
      %49 = sbr.rel (0) target = $region17
    $region16: #{tpu_custom_call.1} parent=1 // pred_region
      _
    $region17: #{tpu_custom_call.1} parent=1 // pred_fallthru
      _
    // Predicated region
    $region18: #{tpu_custom_call.1} parent=1 // pred_check
      _
    $region19: #{tpu_custom_call.1} parent=1 // pred_check_branch
      %51 = sbr.rel (0) target = $region21
    $region20: #{tpu_custom_call.1} parent=1 // pred_region
      %52 = dma.done [#allocation3], 256
    $region21: #{tpu_custom_call.1} parent=1 // pred_fallthru
      _
    // Predicated region
    $region22: #{tpu_custom_call.1} parent=1 // pred_check
      _
    $region23: #{tpu_custom_call.1} parent=1 // pred_check_branch
      %54 = sbr.rel (0) target = $region25
    $region24: #{tpu_custom_call.1} parent=1 // pred_region
      %55 = dma.done [#allocation6], 256
    $region25: #{tpu_custom_call.1} parent=1 // pred_fallthru
      _
    // Predicated region
    $region26: #{tpu_custom_call.1} parent=1 // pred_check
      _
    $region27: #{tpu_custom_call.1} parent=1 // pred_check_branch
      %57 = sbr.rel (0) target = $region29
    $region28: #{tpu_custom_call.1} parent=1 // pred_region
      %58 = dma.done [#allocation6], 512
    $region29: #{tpu_custom_call.1} parent=1 // pred_fallthru
      _
    %v59 = vld [vmem:[#allocation2] sm:$0xff]
    %v60 = vld [vmem:[#allocation2 + $0x8] sm:$0xff]
    %vm61 = vcmask 261120
    %v62 = vsel %vm61, %v59, 0.0
    %63 = vadd.xlane.f32.xlu0 %v62
    %v64 = vpop.xlane.xlu0 %63
    %v65 = vsel %vm61, %v60, 0.0
    %66 = vadd.xlane.f32.xlu0 %v65
    %v67 = vpop.xlane.xlu0 %66
    %v68 = vrcp.pop 32.0
    %v69 = vmul.f32 %v64, %v68
    %v70 = vmul.f32 %v67, %v68
    %v71 = vsub.f32 %v59, %v69
    %v72 = vsub.f32 %v60, %v70
    %v73 = vmul.f32 %v71, %v71
    %v74 = vmul.f32 %v72, %v72
    %v75 = vsel %vm61, %v73, 0.0
    %76 = vadd.xlane.f32.xlu0 %v75
    %v77 = vpop.xlane.xlu0 %76
    %v78 = vsel %vm61, %v74, 0.0
    %79 = vadd.xlane.f32.xlu0 %v78
    %v80 = vpop.xlane.xlu0 %79
    %v81 = vrcp.pop 31.0
    %v82 = vmul.f32 %v77, %v81
    %v83 = vmul.f32 %v80, %v81
    %v84 = vrsqrt.pop %v82
    %v85 = vmul.f32 %v82, %v84
    %vm86 = vcmp.eq.f32.partialorder %v82, inf
    %v87 = vsel %vm86, %v82, %v85
    %vm88 = vcmp.eq.f32.partialorder %v82, 0.0
    %v89 = vand.u32 %v82, 2147483648
    %v90 = vsel %vm88, %v89, %v87
    %v91 = vrsqrt.pop %v83
    %v92 = vmul.f32 %v83, %v91
    %vm93 = vcmp.eq.f32.partialorder %v83, inf
    %v94 = vsel %vm93, %v83, %v92
    %vm95 = vcmp.eq.f32.partialorder %v83, 0.0
    %v96 = vand.u32 %v83, 2147483648
    %v97 = vsel %vm95, %v96, %v94
    %v98 = vadd.f32 %v90, 1e-06
    %v99 = vadd.f32 %v97, 1e-06
    %v100 = vrcp.pop %v98
    %v101 = vmul.f32 %v71, %v100
    %v102 = vrcp.pop %v99
    %v103 = vmul.f32 %v72, %v102
    %v104 = vadd.f32 %v101, 0.0
    %v105 = vadd.f32 %v103, 0.0
    %v106 = vld [vmem:[#allocation7] sm:$0xff]
    %v107 = vld [vmem:[#allocation7 + $0x8] sm:$0xff]
    %v108 = vld [vmem:[#allocation7 + $0x10] sm:$0xff]
    %v109 = vld [vmem:[#allocation7 + $0x18] sm:$0xff]
    %v110 = vld [vmem:[%s3] sm:$0x1]
    %v112 = vlaneseq
    %v113 = vshrl.u32 %v112, 7
    %v114 = vsub.s32 0, %v113
    %v115 = vrot.slane %v110, %v114
    %v118 = vsel %vm61, %v104, 0
    %v121 = vsel %vm61, %v105, 0
    %123 = vmatprep.subr.mxu0 0.0
    %124 = vmatpush1.msra.mxu0 0.0
    %125 = vmatprep.subr.mxu0 0.0
    %126 = vmatpush1.msra.mxu0 0.0
    %127 = vmatprep.subr.mxu0 0.0
    %128 = vmatpush1.msra.mxu0 0.0
    %129 = vmatprep.subr.mxu0 0.0
    %130 = vmatpush1.msra.mxu0 0.0
    %131 = vmatprep.subr.mxu0 0.0
    %132 = vmatpush1.msra.mxu0 0.0
    %133 = vmatprep.subr.mxu0 0.0
    %134 = vmatpush1.msra.mxu0 0.0
    %135 = vmatprep.subr.mxu0 0.0
    %136 = vmatpush1.msra.mxu0 0.0
    %137 = vmatprep.subr.mxu0 0.0
    %138 = vmatpush1.msra.mxu0 0.0
    %139 = vmatprep.subr.mxu0 0.0
    %140 = vmatpush1.msra.mxu0 0.0
    %141 = vmatprep.subr.mxu0 0.0
    %142 = vmatpush1.msra.mxu0 0.0
    %143 = vmatprep.subr.mxu0 0.0
    %144 = vmatpush1.msra.mxu0 0.0
    %145 = vmatprep.subr.mxu0 0.0
    %146 = vmatpush1.msra.mxu0 0.0
    %147 = vmatprep.subr.mxu0 0.0
    %148 = vmatpush1.msra.mxu0 %v109
    %149 = vmatprep.subr.mxu0 0.0
    %150 = vmatpush1.msra.mxu0 %v108
    %151 = vmatprep.subr.mxu0 0.0
    %152 = vmatpush1.msra.mxu0 %v107
    %153 = vmatprep.subr.mxu0 0.0
    %154 = vmatpush1.msra.mxu0 %v106
    %155 = vmatprep.subr.mxu0 0.0
    %156 = vmatpush2.msra.mxu0 0.0
    %157 = vmatprep.subr.mxu0 0.0
    %158 = vmatpush2.msra.mxu0 0.0
    %159 = vmatprep.subr.mxu0 0.0
    %160 = vmatpush2.msra.mxu0 0.0
    %161 = vmatprep.subr.mxu0 0.0
    %162 = vmatpush2.msra.mxu0 0.0
    %163 = vmatprep.subr.mxu0 0.0
    %164 = vmatpush2.msra.mxu0 0.0
    %165 = vmatprep.subr.mxu0 0.0
    %166 = vmatpush2.msra.mxu0 0.0
    %167 = vmatprep.subr.mxu0 0.0
    %168 = vmatpush2.msra.mxu0 0.0
    %169 = vmatprep.subr.mxu0 0.0
    %170 = vmatpush2.msra.mxu0 0.0
    %171 = vmatprep.subr.mxu0 0.0
    %172 = vmatpush2.msra.mxu0 0.0
    %173 = vmatprep.subr.mxu0 0.0
    %174 = vmatpush2.msra.mxu0 0.0
    %175 = vmatprep.subr.mxu0 0.0
    %176 = vmatpush2.msra.mxu0 0.0
    %177 = vmatprep.subr.mxu0 0.0
    %178 = vmatpush2.msra.mxu0 0.0
    %179 = vmatprep.subr.mxu0 0.0
    %180 = vmatpush2.msra.mxu0 0.0
    %181 = vmatprep.subr.mxu0 0.0
    %182 = vmatpush2.msra.mxu0 0.0
    %183 = vmatprep.subr.mxu0 0.0
    %184 = vmatpush2.msra.mxu0 0.0
    %185 = vmatprep.subr.mxu0 0.0
    %186 = vmatpush2.msra.mxu0 0.0
    %187 = vmatprep.mubr.f32.mxu0 0.0
    %188 = vmatmul.mubr.f32.gmra.mxu0 %v118
    %v189 = vpop.f32.mrf.mxu0
    %v190 = vadd.f32 %v115, %v189
    %v191 = vpop.f32.mrf.mxu0
    %192 = vmatprep.mubr.f32.mxu0 0.0
    %193 = vmatmul.mubr.f32.gmra.mxu0 %v121
    %v194 = vpop.f32.mrf.mxu0
    %v195 = vadd.f32 %v115, %v194
    %v196 = vpop.f32.mrf.mxu0
    %197 = vdwg.mxu0
    %v198 = vld [vmem:[#allocation5] sm:$0xff]
    %v199 = vld [vmem:[#allocation5 + $0x8] sm:$0xff]
    %vm200 = vcmp.ge.s32.totalorder %v198, 1677722
    %vm201 = vcmp.ge.s32.totalorder %v199, 1677722
    %v202 = vmul.f32 %v190, 1.1111112
    %v203 = vmul.f32 %v195, 1.1111112
    %v204 = vsel %vm200, %v202, 0.0
    %v205 = vsel %vm201, %v203, 0.0
    %v206 = vadd.f32 %v59, %v204
    %v207 = vadd.f32 %v60, %v205
    %208 = vst.msk [vmem:[#allocation8] sm:$0xff] %vm61, %v206
    %209 = vst.msk [vmem:[#allocation8 + $0x8] sm:$0xff] %vm61, %v207
    // Predicated region
    $region30: #{tpu_custom_call.1} parent=1 // pred_check
      _
    $region31: #{tpu_custom_call.1} parent=1 // pred_check_branch
      %211 = sbr.rel (0) target = $region33
    $region32: #{tpu_custom_call.1} parent=1 // pred_region
      %s213 = ssub.s32 256, 256
      %214 = vsyncadd [#allocation4], %s213
      %s215 = sshll.u32 [#allocation8], 4
      %s216 = int_to_ptr.vmem [resolvable:$true] %s215
      %221 = dma.vmem_to_hbm [thread:$0]  %s216, 256, %s4, [#allocation4], 128, 128, 8
    $region33: #{tpu_custom_call.1} parent=1 // pred_fallthru
      _
    // Predicated region
    $region34: #{tpu_custom_call.1} parent=1 // pred_check
      _
    $region35: #{tpu_custom_call.1} parent=1 // pred_check_branch
      %223 = sbr.rel (0) target = $region37
    $region36: #{tpu_custom_call.1} parent=1 // pred_region
      %224 = dma.done [#allocation4], 256
    $region37: #{tpu_custom_call.1} parent=1 // pred_fallthru
      _
    %225 = vsyncpa [#allocation3], 1
    %226 = vsyncpa [#allocation6], 1
    %227 = vsyncpa [#allocation4], 1

</llo_original>
